<compile_context>
chip_gen: v7x
topology: tpu7x:2x2x1
jax: 0.10.0
libtpu: 0.0.40
codegen_flags: <defaults>
</compile_context>

<pallas_src>
import functools

import jax
import jax.numpy as jnp
from jax.experimental import pallas as pl
from jax.experimental.pallas import tpu as pltpu


def _round_up(v, m):
    return ((v + m - 1) // m) * m


def _choose_tiles(n):
    """Pick (tile_m, tile_k, n_pad) for the node dimension."""
    if n >= 512:
        tile_m, tile_k = 256, 512
    elif n >= 256:
        tile_m, tile_k = 256, 256
    else:
        t = _round_up(n, 8)          # tiny/toy case: single tile over rows & K
        tile_m, tile_k = t, t
    n_pad = _round_up(n, max(tile_m, tile_k))
    return tile_m, tile_k, n_pad


# --------------------------------------------------------------------------
# Pallas kernel: one SAGEConv layer, K-tiled mean aggregation + fused GEMMs
# --------------------------------------------------------------------------
def _sage_layer_kernel(a_ref, xk_ref, xr_ref, wl_ref, wr_ref, b_ref,
                       o_ref, acc_ref, *, apply_relu):
    # a_ref   : (TM, TK)            bf16 row-normalized adjacency tile
    # xk_ref  : (TK, Cin_pad)       bf16 neighbor-feature rows for this K tile
    # xr_ref  : (TM, Cin_pad)       bf16 root-feature rows for this row tile
    # wl_ref  : (Cin_pad, Cout_pad) bf16 W_l
    # wr_ref  : (Cin_pad, Cout_pad) bf16 W_r
    # b_ref   : (1, Cout_pad)       f32 bias of lin_l
    # o_ref   : (TM, Cout_pad)
    # acc_ref : (TM, Cin_pad)       f32 aggregation accumulator (VMEM scratch)
    k = pl.program_id(1)

    @pl.when(k == 0)
    def _():
        acc_ref[...] = jnp.zeros_like(acc_ref)

    # Mean aggregation, accumulated over neighbor (column) tiles of A.
    acc_ref[...] += jnp.dot(a_ref[...], xk_ref[...],
                            preferred_element_type=jnp.float32)

    @pl.when(k == pl.num_programs(1) - 1)
    def _():
        agg = acc_ref[...].astype(wl_ref.dtype)
        out = jnp.dot(agg, wl_ref[...], preferred_element_type=jnp.float32)
        out = out + jnp.dot(xr_ref[...], wr_ref[...],
                            preferred_element_type=jnp.float32)
        out = out + b_ref[...]
        if apply_relu:
            out = jnp.maximum(out, 0.0)
        o_ref[...] = out.astype(o_ref.dtype)


def sage_conv_layer(a_pad, x_pad, w_l, w_r, b_pad, *, apply_relu, out_dtype):
    """One SAGEConv layer on padded, bf16 inputs. Returns (n_pad, c_out_pad)."""
    n_pad, c_in_pad = x_pad.shape
    c_out_pad = w_l.shape[1]
    tile_m, tile_k, n_pad2 = _choose_tiles(n_pad)
    assert n_pad2 == n_pad, (n_pad2, n_pad)

    kernel = functools.partial(_sage_layer_kernel, apply_relu=apply_relu)

    flops = (2 * n_pad * n_pad * c_in_pad
             + 2 * n_pad * (2 * c_in_pad) * c_out_pad)
    bytes_accessed = (n_pad * n_pad * 2                 # A (bf16)
                      + 2 * n_pad * c_in_pad * 2        # X, two streams (bf16)
                      + 2 * c_in_pad * c_out_pad * 2    # W_l, W_r (bf16)
                      + c_out_pad * 4                   # bias (f32)
                      + n_pad * c_out_pad * jnp.dtype(out_dtype).itemsize)

    return pl.pallas_call(
        kernel,
        out_shape=jax.ShapeDtypeStruct((n_pad, c_out_pad), out_dtype),
        grid_spec=pltpu.PrefetchScalarGridSpec(
            num_scalar_prefetch=0,
            grid=(n_pad // tile_m, n_pad // tile_k),
            in_specs=[
                pl.BlockSpec((tile_m, tile_k), lambda i, k: (i, k)),         # A tile
                pl.BlockSpec((tile_k, c_in_pad), lambda i, k: (k, 0)),       # X (K-tiled)
                pl.BlockSpec((tile_m, c_in_pad), lambda i, k: (i, 0)),       # X root rows
                pl.BlockSpec((c_in_pad, c_out_pad), lambda i, k: (0, 0)),    # W_l
                pl.BlockSpec((c_in_pad, c_out_pad), lambda i, k: (0, 0)),    # W_r
                pl.BlockSpec((1, c_out_pad), lambda i, k: (0, 0)),           # bias
            ],
            out_specs=pl.BlockSpec((tile_m, c_out_pad), lambda i, k: (i, 0)),
            scratch_shapes=[pltpu.VMEM((tile_m, c_in_pad), jnp.float32)],
        ),
        compiler_params=pltpu.CompilerParams(
            dimension_semantics=("parallel", "arbitrary")),
        cost_estimate=pl.CostEstimate(flops=flops, transcendentals=0,
                                      bytes_accessed=bytes_accessed),
    )(a_pad, x_pad, x_pad, w_l, w_r, b_pad)


# --------------------------------------------------------------------------
# SAGE model: stack of SAGEConv layers (ReLU between, none after the last).
# --------------------------------------------------------------------------
def init_sage_params(key, in_channels, hidden_channels, out_channels, num_layers):
    dims = [in_channels] + [hidden_channels] * (num_layers - 1) + [out_channels]
    params = []
    for li in range(num_layers):
        c_in, c_out = dims[li], dims[li + 1]
        key, k1, k2 = jax.random.split(key, 3)
        scale = 1.0 / jnp.sqrt(jnp.float32(c_in))
        w_l = jax.random.normal(k1, (c_in, c_out), jnp.float32) * scale
        w_r = jax.random.normal(k2, (c_in, c_out), jnp.float32) * scale
        b = jnp.zeros((c_out,), jnp.float32)
        params.append((w_l, w_r, b))
    return params


def _pad_weights(w_l, w_r, b, c_in_pad, c_out_pad):
    c_in, c_out = w_l.shape
    wl_p = jnp.zeros((c_in_pad, c_out_pad), jnp.float32).at[:c_in, :c_out].set(w_l)
    wr_p = jnp.zeros((c_in_pad, c_out_pad), jnp.float32).at[:c_in, :c_out].set(w_r)
    b_p = jnp.zeros((1, c_out_pad), jnp.float32).at[0, :c_out].set(b)
    return wl_p.astype(jnp.bfloat16), wr_p.astype(jnp.bfloat16), b_p


def sage_forward(params, x, a_norm, dropout=0.5):
    # TODO(synk): training-mode dropout (stochastic mask) not applied; eval-mode
    # F.dropout is the identity, matching the reference at inference.
    # TODO(synk): full multi-layer fusion in one pallas_call (intermediate
    # activations resident) not implemented; per-layer calls are used.
    del dropout
    n, c_in = x.shape
    _, _, n_pad = _choose_tiles(n)
    num_layers = len(params)

    # Per-layer padded channel widths (multiples of 128 -> lane-dense stores).
    c_pads = [_round_up(p[0].shape[0], 128) for p in params]
    c_pads.append(_round_up(params[-1][0].shape[1], 128))

    # Zero-padded, bf16 inputs: padded rows/cols contribute nothing.
    a_pad = jnp.zeros((n_pad, n_pad), jnp.float32).at[:n, :n].set(a_norm)
    a_pad = a_pad.astype(jnp.bfloat16)
    x_pad = jnp.zeros((n_pad, c_pads[0]), jnp.float32).at[:n, :c_in].set(x)
    x_pad = x_pad.astype(jnp.bfloat16)

    for li, (w_l, w_r, b) in enumerate(params):
        last = (li == num_layers - 1)
        wl_p, wr_p, b_p = _pad_weights(w_l, w_r, b, c_pads[li], c_pads[li + 1])
        x_pad = sage_conv_layer(
            a_pad, x_pad, wl_p, wr_p, b_p,
            apply_relu=not last,
            out_dtype=jnp.float32 if last else jnp.bfloat16)

    c_out = params[-1][0].shape[1]
    return x_pad[:n, :c_out]


# --------------------------------------------------------------------------
# Main
# --------------------------------------------------------------------------
if __name__ == "__main__":
    N = 16            # number of nodes
    IN_CH = 8
    HIDDEN = 32
    OUT_CH = 16
    NUM_LAYERS = 3
    DROPOUT = 0.5

    key = jax.random.PRNGKey(0)
    kx, ka, kp = jax.random.split(key, 3)

    # Node features.
    x = jax.random.normal(kx, (N, IN_CH), jnp.float32)

    # Random binary adjacency (self-loops removed), row-normalized for mean
    # aggregation: A_mean[i, j] = A[i, j] / max(deg(i), 1).
    adj = (jax.random.uniform(ka, (N, N)) < 0.25).astype(jnp.float32)
    adj = adj * (1.0 - jnp.eye(N, dtype=jnp.float32))
    deg = jnp.maximum(adj.sum(axis=1, keepdims=True), 1.0)
    a_norm = adj / deg

    params = init_sage_params(kp, IN_CH, HIDDEN, OUT_CH, NUM_LAYERS)

    fwd = jax.jit(functools.partial(sage_forward, dropout=DROPOUT))
    out = fwd(params, x, a_norm)
    out = jax.block_until_ready(out)

    assert out.shape == (N, OUT_CH), out.shape
    assert jnp.all(jnp.isfinite(out))

    # Cross-check against a pure-JAX f32 reference (loose tol: bf16 matmuls).
    ref = x
    for li, (w_l, w_r, b) in enumerate(params):
        ref = a_norm @ ref @ w_l + ref @ w_r + b
        if li != NUM_LAYERS - 1:
            ref = jnp.maximum(ref, 0.0)
    rel_err = jnp.max(jnp.abs(out - ref)) / (jnp.max(jnp.abs(ref)) + 1e-6)
    assert rel_err < 5e-2, rel_err

    print("KERNEL_OK")
</pallas_src>

<mosaic_0001>
module attributes {stable_mosaic.version = 11 : i64} {
  func.func @_sage_layer_kernel(%arg0: i32, %arg1: i32, %arg2: memref<16x16xbf16, #tpu.memory_space<vmem>>, %arg3: memref<16x128xbf16, #tpu.memory_space<vmem>>, %arg4: memref<16x128xbf16, #tpu.memory_space<vmem>>, %arg5: memref<128x128xbf16, #tpu.memory_space<vmem>>, %arg6: memref<128x128xbf16, #tpu.memory_space<vmem>>, %arg7: memref<1x128xf32, #tpu.memory_space<vmem>>, %arg8: memref<16x128xbf16, #tpu.memory_space<vmem>>, %arg9: memref<16x128xf32, #tpu.memory_space<vmem>>) attributes {dimension_semantics = [#tpu.dimension_semantics<parallel>, #tpu.dimension_semantics<arbitrary>], iteration_bounds = array<i64: 1, 1>, scalar_prefetch = 0 : i64, scratch_operands = 1 : i64, tpu.core_type = #tpu.core_type<tc>, window_params = [{transform_indices = @transform_0, window_bounds = array<i64: 16, 16>}, {transform_indices = @transform_1, window_bounds = array<i64: 16, 128>}, {transform_indices = @transform_2, window_bounds = array<i64: 16, 128>}, {pipeline_mode = #tpu.pipeline_mode<synchronous>, transform_indices = @transform_3, window_bounds = array<i64: 128, 128>}, {pipeline_mode = #tpu.pipeline_mode<synchronous>, transform_indices = @transform_4, window_bounds = array<i64: 128, 128>}, {pipeline_mode = #tpu.pipeline_mode<synchronous>, transform_indices = @transform_5, window_bounds = array<i64: 1, 128>}, {transform_indices = @transform_6, window_bounds = array<i64: 16, 128>}]} {
    %c0_i32 = arith.constant 0 : i32
    %0 = arith.cmpi eq, %arg1, %c0_i32 : i32
    %1 = arith.extui %0 : i1 to i32
    %c0_i32_0 = arith.constant 0 : i32
    %2 = arith.cmpi ne, %1, %c0_i32_0 : i32
    scf.if %2 {
      %cst_10 = arith.constant 0.000000e+00 : f32
      %12 = vector.broadcast %cst_10 : f32 to vector<16x128xf32>
      %c0_11 = arith.constant 0 : index
      %c0_12 = arith.constant 0 : index
      %13 = vector.load %arg9[%c0_11, %c0_12] : memref<16x128xf32, #tpu.memory_space<vmem>>, vector<16x128xf32>
      tpu.vector_store %arg9[%c0_11, %c0_12], %12 {strides = array<i32>} : memref<16x128xf32, #tpu.memory_space<vmem>>, vector<16x128xf32>,
    } else {
    }
    %c0 = arith.constant 0 : index
    %c0_1 = arith.constant 0 : index
    %3 = vector.load %arg9[%c0, %c0_1] : memref<16x128xf32, #tpu.memory_space<vmem>>, vector<16x128xf32>
    %c0_2 = arith.constant 0 : index
    %c0_3 = arith.constant 0 : index
    %4 = vector.load %arg2[%c0_2, %c0_3] : memref<16x16xbf16, #tpu.memory_space<vmem>>, vector<16x16xbf16>
    %c0_4 = arith.constant 0 : index
    %c0_5 = arith.constant 0 : index
    %5 = vector.load %arg3[%c0_4, %c0_5] : memref<16x128xbf16, #tpu.memory_space<vmem>>, vector<16x128xbf16>
    %cst = arith.constant dense<0.000000e+00> : vector<16x128xf32>
    %6 = tpu.matmul %4, %5, %cst {dimension_numbers = #tpu.dot_dimension_numbers<[1], [0], [0], [1], [0, 0, 1, 1], [], []>} : vector<16x16xbf16>, vector<16x128xbf16>, vector<16x128xf32> -> vector<16x128xf32>
    %7 = arith.addf %3, %6 : vector<16x128xf32>
    %c0_6 = arith.constant 0 : index
    %c0_7 = arith.constant 0 : index
    %8 = vector.load %arg9[%c0_6, %c0_7] : memref<16x128xf32, #tpu.memory_space<vmem>>, vector<16x128xf32>
    tpu.vector_store %arg9[%c0_6, %c0_7], %7 {strides = array<i32>} : memref<16x128xf32, #tpu.memory_space<vmem>>, vector<16x128xf32>,
    %c0_i32_8 = arith.constant 0 : i32
    %9 = arith.cmpi eq, %arg1, %c0_i32_8 : i32
    %10 = arith.extui %9 : i1 to i32
    %c0_i32_9 = arith.constant 0 : i32
    %11 = arith.cmpi ne, %10, %c0_i32_9 : i32
    scf.if %11 {
      %c0_10 = arith.constant 0 : index
      %c0_11 = arith.constant 0 : index
      %12 = vector.load %arg9[%c0_10, %c0_11] : memref<16x128xf32, #tpu.memory_space<vmem>>, vector<16x128xf32>
      %13 = arith.truncf %12 : vector<16x128xf32> to vector<16x128xbf16>
      %c0_12 = arith.constant 0 : index
      %c0_13 = arith.constant 0 : index
      %14 = vector.load %arg5[%c0_12, %c0_13] : memref<128x128xbf16, #tpu.memory_space<vmem>>, vector<128x128xbf16>
      %cst_14 = arith.constant dense<0.000000e+00> : vector<16x128xf32>
      %15 = tpu.matmul %13, %14, %cst_14 {dimension_numbers = #tpu.dot_dimension_numbers<[1], [0], [0], [1], [0, 0, 1, 1], [], []>} : vector<16x128xbf16>, vector<128x128xbf16>, vector<16x128xf32> -> vector<16x128xf32>
      %c0_15 = arith.constant 0 : index
      %c0_16 = arith.constant 0 : index
      %16 = vector.load %arg4[%c0_15, %c0_16] : memref<16x128xbf16, #tpu.memory_space<vmem>>, vector<16x128xbf16>
      %c0_17 = arith.constant 0 : index
      %c0_18 = arith.constant 0 : index
      %17 = vector.load %arg6[%c0_17, %c0_18] : memref<128x128xbf16, #tpu.memory_space<vmem>>, vector<128x128xbf16>
      %cst_19 = arith.constant dense<0.000000e+00> : vector<16x128xf32>
      %18 = tpu.matmul %16, %17, %cst_19 {dimension_numbers = #tpu.dot_dimension_numbers<[1], [0], [0], [1], [0, 0, 1, 1], [], []>} : vector<16x128xbf16>, vector<128x128xbf16>, vector<16x128xf32> -> vector<16x128xf32>
      %19 = arith.addf %15, %18 : vector<16x128xf32>
      %c0_20 = arith.constant 0 : index
      %c0_21 = arith.constant 0 : index
      %20 = vector.load %arg7[%c0_20, %c0_21] : memref<1x128xf32, #tpu.memory_space<vmem>>, vector<1x128xf32>
      %21 = vector.broadcast %20 : vector<1x128xf32> to vector<16x128xf32>
      %22 = arith.addf %19, %21 : vector<16x128xf32>
      %cst_22 = arith.constant 0.000000e+00 : f32
      %23 = vector.broadcast %cst_22 : f32 to vector<16x128xf32>
      %24 = arith.maximumf %22, %23 : vector<16x128xf32>
      %25 = arith.truncf %24 : vector<16x128xf32> to vector<16x128xbf16>
      %c0_23 = arith.constant 0 : index
      %c0_24 = arith.constant 0 : index
      %26 = vector.load %arg8[%c0_23, %c0_24] : memref<16x128xbf16, #tpu.memory_space<vmem>>, vector<16x128xbf16>
      tpu.vector_store %arg8[%c0_23, %c0_24], %25 {strides = array<i32>} : memref<16x128xbf16, #tpu.memory_space<vmem>>, vector<16x128xbf16>,
    } else {
    }
    return
  }
  func.func @transform_0(%arg0: i32, %arg1: i32) -> (i32, i32) {
    %c0_i32 = arith.constant 0 : i32
    return %arg0, %arg1 : i32, i32
  }
  func.func @transform_1(%arg0: i32, %arg1: i32) -> (i32, i32) {
    %c0_i32 = arith.constant 0 : i32
    %c0_i32_0 = arith.constant 0 : i32
    return %arg1, %c0_i32 : i32, i32
  }
  func.func @transform_2(%arg0: i32, %arg1: i32) -> (i32, i32) {
    %c0_i32 = arith.constant 0 : i32
    %c0_i32_0 = arith.constant 0 : i32
    return %arg0, %c0_i32 : i32, i32
  }
  func.func @transform_3(%arg0: i32, %arg1: i32) -> (i32, i32) {
    %c0_i32 = arith.constant 0 : i32
    %c0_i32_0 = arith.constant 0 : i32
    %c0_i32_1 = arith.constant 0 : i32
    return %c0_i32, %c0_i32_0 : i32, i32
  }
  func.func @transform_4(%arg0: i32, %arg1: i32) -> (i32, i32) {
    %c0_i32 = arith.constant 0 : i32
    %c0_i32_0 = arith.constant 0 : i32
    %c0_i32_1 = arith.constant 0 : i32
    return %c0_i32, %c0_i32_0 : i32, i32
  }
  func.func @transform_5(%arg0: i32, %arg1: i32) -> (i32, i32) {
    %c0_i32 = arith.constant 0 : i32
    %c0_i32_0 = arith.constant 0 : i32
    %c0_i32_1 = arith.constant 0 : i32
    return %c0_i32, %c0_i32_0 : i32, i32
  }
  func.func @transform_6(%arg0: i32, %arg1: i32) -> (i32, i32) {
    %c0_i32 = arith.constant 0 : i32
    %c0_i32_0 = arith.constant 0 : i32
    return %arg0, %c0_i32 : i32, i32
  }
}

module attributes {stable_mosaic.version = 11 : i64} {
  func.func @_sage_layer_kernel(%arg0: i32, %arg1: i32, %arg2: memref<16x16xbf16, #tpu.memory_space<vmem>>, %arg3: memref<16x128xbf16, #tpu.memory_space<vmem>>, %arg4: memref<16x128xbf16, #tpu.memory_space<vmem>>, %arg5: memref<128x128xbf16, #tpu.memory_space<vmem>>, %arg6: memref<128x128xbf16, #tpu.memory_space<vmem>>, %arg7: memref<1x128xf32, #tpu.memory_space<vmem>>, %arg8: memref<16x128xf32, #tpu.memory_space<vmem>>, %arg9: memref<16x128xf32, #tpu.memory_space<vmem>>) attributes {dimension_semantics = [#tpu.dimension_semantics<parallel>, #tpu.dimension_semantics<arbitrary>], iteration_bounds = array<i64: 1, 1>, scalar_prefetch = 0 : i64, scratch_operands = 1 : i64, tpu.core_type = #tpu.core_type<tc>, window_params = [{transform_indices = @transform_0, window_bounds = array<i64: 16, 16>}, {transform_indices = @transform_1, window_bounds = array<i64: 16, 128>}, {transform_indices = @transform_2, window_bounds = array<i64: 16, 128>}, {pipeline_mode = #tpu.pipeline_mode<synchronous>, transform_indices = @transform_3, window_bounds = array<i64: 128, 128>}, {pipeline_mode = #tpu.pipeline_mode<synchronous>, transform_indices = @transform_4, window_bounds = array<i64: 128, 128>}, {pipeline_mode = #tpu.pipeline_mode<synchronous>, transform_indices = @transform_5, window_bounds = array<i64: 1, 128>}, {transform_indices = @transform_6, window_bounds = array<i64: 16, 128>}]} {
    %c0_i32 = arith.constant 0 : i32
    %0 = arith.cmpi eq, %arg1, %c0_i32 : i32
    %1 = arith.extui %0 : i1 to i32
    %c0_i32_0 = arith.constant 0 : i32
    %2 = arith.cmpi ne, %1, %c0_i32_0 : i32
    scf.if %2 {
      %cst_10 = arith.constant 0.000000e+00 : f32
      %12 = vector.broadcast %cst_10 : f32 to vector<16x128xf32>
      %c0_11 = arith.constant 0 : index
      %c0_12 = arith.constant 0 : index
      %13 = vector.load %arg9[%c0_11, %c0_12] : memref<16x128xf32, #tpu.memory_space<vmem>>, vector<16x128xf32>
      tpu.vector_store %arg9[%c0_11, %c0_12], %12 {strides = array<i32>} : memref<16x128xf32, #tpu.memory_space<vmem>>, vector<16x128xf32>,
    } else {
    }
    %c0 = arith.constant 0 : index
    %c0_1 = arith.constant 0 : index
    %3 = vector.load %arg9[%c0, %c0_1] : memref<16x128xf32, #tpu.memory_space<vmem>>, vector<16x128xf32>
    %c0_2 = arith.constant 0 : index
    %c0_3 = arith.constant 0 : index
    %4 = vector.load %arg2[%c0_2, %c0_3] : memref<16x16xbf16, #tpu.memory_space<vmem>>, vector<16x16xbf16>
    %c0_4 = arith.constant 0 : index
    %c0_5 = arith.constant 0 : index
    %5 = vector.load %arg3[%c0_4, %c0_5] : memref<16x128xbf16, #tpu.memory_space<vmem>>, vector<16x128xbf16>
    %cst = arith.constant dense<0.000000e+00> : vector<16x128xf32>
    %6 = tpu.matmul %4, %5, %cst {dimension_numbers = #tpu.dot_dimension_numbers<[1], [0], [0], [1], [0, 0, 1, 1], [], []>} : vector<16x16xbf16>, vector<16x128xbf16>, vector<16x128xf32> -> vector<16x128xf32>
    %7 = arith.addf %3, %6 : vector<16x128xf32>
    %c0_6 = arith.constant 0 : index
    %c0_7 = arith.constant 0 : index
    %8 = vector.load %arg9[%c0_6, %c0_7] : memref<16x128xf32, #tpu.memory_space<vmem>>, vector<16x128xf32>
    tpu.vector_store %arg9[%c0_6, %c0_7], %7 {strides = array<i32>} : memref<16x128xf32, #tpu.memory_space<vmem>>, vector<16x128xf32>,
    %c0_i32_8 = arith.constant 0 : i32
    %9 = arith.cmpi eq, %arg1, %c0_i32_8 : i32
    %10 = arith.extui %9 : i1 to i32
    %c0_i32_9 = arith.constant 0 : i32
    %11 = arith.cmpi ne, %10, %c0_i32_9 : i32
    scf.if %11 {
      %c0_10 = arith.constant 0 : index
      %c0_11 = arith.constant 0 : index
      %12 = vector.load %arg9[%c0_10, %c0_11] : memref<16x128xf32, #tpu.memory_space<vmem>>, vector<16x128xf32>
      %13 = arith.truncf %12 : vector<16x128xf32> to vector<16x128xbf16>
      %c0_12 = arith.constant 0 : index
      %c0_13 = arith.constant 0 : index
      %14 = vector.load %arg5[%c0_12, %c0_13] : memref<128x128xbf16, #tpu.memory_space<vmem>>, vector<128x128xbf16>
      %cst_14 = arith.constant dense<0.000000e+00> : vector<16x128xf32>
      %15 = tpu.matmul %13, %14, %cst_14 {dimension_numbers = #tpu.dot_dimension_numbers<[1], [0], [0], [1], [0, 0, 1, 1], [], []>} : vector<16x128xbf16>, vector<128x128xbf16>, vector<16x128xf32> -> vector<16x128xf32>
      %c0_15 = arith.constant 0 : index
      %c0_16 = arith.constant 0 : index
      %16 = vector.load %arg4[%c0_15, %c0_16] : memref<16x128xbf16, #tpu.memory_space<vmem>>, vector<16x128xbf16>
      %c0_17 = arith.constant 0 : index
      %c0_18 = arith.constant 0 : index
      %17 = vector.load %arg6[%c0_17, %c0_18] : memref<128x128xbf16, #tpu.memory_space<vmem>>, vector<128x128xbf16>
      %cst_19 = arith.constant dense<0.000000e+00> : vector<16x128xf32>
      %18 = tpu.matmul %16, %17, %cst_19 {dimension_numbers = #tpu.dot_dimension_numbers<[1], [0], [0], [1], [0, 0, 1, 1], [], []>} : vector<16x128xbf16>, vector<128x128xbf16>, vector<16x128xf32> -> vector<16x128xf32>
      %19 = arith.addf %15, %18 : vector<16x128xf32>
      %c0_20 = arith.constant 0 : index
      %c0_21 = arith.constant 0 : index
      %20 = vector.load %arg7[%c0_20, %c0_21] : memref<1x128xf32, #tpu.memory_space<vmem>>, vector<1x128xf32>
      %21 = vector.broadcast %20 : vector<1x128xf32> to vector<16x128xf32>
      %22 = arith.addf %19, %21 : vector<16x128xf32>
      %c0_22 = arith.constant 0 : index
      %c0_23 = arith.constant 0 : index
      %23 = vector.load %arg8[%c0_22, %c0_23] : memref<16x128xf32, #tpu.memory_space<vmem>>, vector<16x128xf32>
      tpu.vector_store %arg8[%c0_22, %c0_23], %22 {strides = array<i32>} : memref<16x128xf32, #tpu.memory_space<vmem>>, vector<16x128xf32>,
    } else {
    }
    return
  }
  func.func @transform_0(%arg0: i32, %arg1: i32) -> (i32, i32) {
    %c0_i32 = arith.constant 0 : i32
    return %arg0, %arg1 : i32, i32
  }
  func.func @transform_1(%arg0: i32, %arg1: i32) -> (i32, i32) {
    %c0_i32 = arith.constant 0 : i32
    %c0_i32_0 = arith.constant 0 : i32
    return %arg1, %c0_i32 : i32, i32
  }
  func.func @transform_2(%arg0: i32, %arg1: i32) -> (i32, i32) {
    %c0_i32 = arith.constant 0 : i32
    %c0_i32_0 = arith.constant 0 : i32
    return %arg0, %c0_i32 : i32, i32
  }
  func.func @transform_3(%arg0: i32, %arg1: i32) -> (i32, i32) {
    %c0_i32 = arith.constant 0 : i32
    %c0_i32_0 = arith.constant 0 : i32
    %c0_i32_1 = arith.constant 0 : i32
    return %c0_i32, %c0_i32_0 : i32, i32
  }
  func.func @transform_4(%arg0: i32, %arg1: i32) -> (i32, i32) {
    %c0_i32 = arith.constant 0 : i32
    %c0_i32_0 = arith.constant 0 : i32
    %c0_i32_1 = arith.constant 0 : i32
    return %c0_i32, %c0_i32_0 : i32, i32
  }
  func.func @transform_5(%arg0: i32, %arg1: i32) -> (i32, i32) {
    %c0_i32 = arith.constant 0 : i32
    %c0_i32_0 = arith.constant 0 : i32
    %c0_i32_1 = arith.constant 0 : i32
    return %c0_i32, %c0_i32_0 : i32, i32
  }
  func.func @transform_6(%arg0: i32, %arg1: i32) -> (i32, i32) {
    %c0_i32 = arith.constant 0 : i32
    %c0_i32_0 = arith.constant 0 : i32
    return %arg0, %c0_i32 : i32, i32
  }
}

</mosaic_0001>

<llo_original>
// kernel: sage_forward.3
$region0: #{sage_forward.3}
  #allocation0 [shape = 'u32[]', space=smem, size = 0x4, offset = 0x4, fixed_abs, tag = 'smem constant byte address 0x4 - core index']
  #allocation1 [shape = 'u32[144,128]{1,0:T(1,128)}', space=vmem, size = 0x12000, scoped, tag = 'internal scratch']
  #allocation2 [shape = 'f32[16,128]{1,0:T(8,128)}', space=vmem, size = 0x2000, scoped, tag = 'scratch operand']
  %s0 = inlined_call_operand.vmem [shape: bf16[16,16], index: 0, kind: input, shape index: {}]
  %s1 = inlined_call_operand.vmem [shape: bf16[16,128], index: 1, kind: input, shape index: {}, may-alias: {1,2}]
  %s2 = inlined_call_operand.vmem [shape: bf16[16,128], index: 2, kind: input, shape index: {}, may-alias: {1,2}]
  %s3 = inlined_call_operand.vmem [shape: bf16[128,128], index: 3, kind: input, shape index: {}]
  %s4 = inlined_call_operand.vmem [shape: bf16[128,128], index: 4, kind: input, shape index: {}]
  %s5 = inlined_call_operand.vmem [shape: f32[1,128], index: 5, kind: input, shape index: {}]
  %s6 = inlined_call_operand.vmem [shape: bf16[16,128], index: 6, kind: output, shape index: {}]
  %s7 = sld [smem:[#allocation0]]
  $region42: #{sage_forward.3} parent=0
    _
  %s9 = ssub.s32 1, %s7
  %s10 = scalar_select 0, %s9, %s7
  // Predicated region
  $region2: #{sage_forward.3} parent=0 // pred_check
    _
  $region3: #{sage_forward.3} parent=0 // pred_check_branch
    %12 = sbr.rel (0) target = $region5
  $region4: #{sage_forward.3} parent=0 // pred_region
    _
  $region5: #{sage_forward.3} parent=0 // pred_fallthru
    _
  // Predicated region
  $region6: #{sage_forward.3} parent=0 // pred_check
    _
  $region7: #{sage_forward.3} parent=0 // pred_check_branch
    %14 = sbr.rel (0) target = $region9
  $region8: #{sage_forward.3} parent=0 // pred_region
    _
  $region9: #{sage_forward.3} parent=0 // pred_fallthru
    _
  // Predicated region
  $region10: #{sage_forward.3} parent=0 // pred_check
    _
  $region11: #{sage_forward.3} parent=0 // pred_check_branch
    %16 = sbr.rel (0) target = $region13
  $region12: #{sage_forward.3} parent=0 // pred_region
    _
  $region13: #{sage_forward.3} parent=0 // pred_fallthru
    _
  // Predicated region
  $region14: #{sage_forward.3} parent=0 // pred_check
    _
  $region15: #{sage_forward.3} parent=0 // pred_check_branch
    %18 = sbr.rel (0) target = $region17
  $region16: #{sage_forward.3} parent=0 // pred_region
    _
  $region17: #{sage_forward.3} parent=0 // pred_fallthru
    _
  // Predicated region
  $region18: #{sage_forward.3} parent=0 // pred_check
    _
  $region19: #{sage_forward.3} parent=0 // pred_check_branch
    %20 = sbr.rel (0) target = $region21
  $region20: #{sage_forward.3} parent=0 // pred_region
    _
  $region21: #{sage_forward.3} parent=0 // pred_fallthru
    _
  // Predicated region
  $region22: #{sage_forward.3} parent=0 // pred_check
    _
  $region23: #{sage_forward.3} parent=0 // pred_check_branch
    %22 = sbr.rel (0) target = $region25
  $region24: #{sage_forward.3} parent=0 // pred_region
    _
  $region25: #{sage_forward.3} parent=0 // pred_fallthru
    _
  %p24 = scmp.eq.s32.totalorder 0, 0
  // Predicated region
  $region26: #{sage_forward.3} parent=0 // pred_check
    %p25 = pneg %p24
  $region27: #{sage_forward.3} parent=0 // pred_check_branch
    %27 = sbr.rel (%p25) target = $region29
  $region28: #{sage_forward.3} parent=0 // pred_region
    %28 = vst [vmem:[#allocation2] sm:$0xff] 0.0
    %29 = vst [vmem:[#allocation2 + $0x8] sm:$0xff] 0.0
  $region29: #{sage_forward.3} parent=0 // pred_fallthru
    _
  %v30 = vld [vmem:[#allocation2] sm:$0xff]
  %v31 = vld [vmem:[#allocation2 + $0x8] sm:$0xff]
  %v32 = vld [vmem:[%s0] sm:$0xf]
  %v33 = vld [vmem:[%s0 + $0x4] sm:$0xf]
  %v34 = vld [vmem:[%s1] sm:$0xf]
  %v35 = vld [vmem:[%s1 + $0x4] sm:$0xf]
  %v38 = vunpack.c.l.b16 %v32
  %v39 = vunpack.c.l.b16 %v33
  %v40 = vpack.c.b16 %v39, %v38
  %v43 = vunpack.c.l.b16 %v34
  %v44 = vunpack.c.l.b16 %v35
  %v45 = vpack.c.b16 %v44, %v43
  %vm47 = vcmask 130048
  %v49 = vsel %vm47, %v40, 0
  %51 = vmatprep.subr.bf16.mxu0 0
  %52 = vmatpush1.bf16.msra.mxu0 %v45
  %53 = vmatprep.subr.bf16.mxu0 0
  %54 = vmatpush1.bf16.msra.mxu0 0
  %55 = vmatprep.subr.bf16.mxu0 0
  %56 = vmatpush1.bf16.msra.mxu0 0
  %57 = vmatprep.subr.bf16.mxu0 0
  %58 = vmatpush1.bf16.msra.mxu0 0
  %59 = vmatprep.subr.bf16.mxu0 0
  %60 = vmatpush1.bf16.msra.mxu0 0
  %61 = vmatprep.subr.bf16.mxu0 0
  %62 = vmatpush1.bf16.msra.mxu0 0
  %63 = vmatprep.subr.bf16.mxu0 0
  %64 = vmatpush1.bf16.msra.mxu0 0
  %65 = vmatprep.subr.bf16.mxu0 0
  %66 = vmatpush1.bf16.msra.mxu0 0
  %67 = vmatprep.subr.bf16.mxu0 0
  %68 = vmatpush1.bf16.msra.mxu0 0
  %69 = vmatprep.subr.bf16.mxu0 0
  %70 = vmatpush1.bf16.msra.mxu0 0
  %71 = vmatprep.subr.bf16.mxu0 0
  %72 = vmatpush1.bf16.msra.mxu0 0
  %73 = vmatprep.subr.bf16.mxu0 0
  %74 = vmatpush1.bf16.msra.mxu0 0
  %75 = vmatprep.subr.bf16.mxu0 0
  %76 = vmatpush1.bf16.msra.mxu0 0
  %77 = vmatprep.subr.bf16.mxu0 0
  %78 = vmatpush1.bf16.msra.mxu0 0
  %79 = vmatprep.subr.bf16.mxu0 0
  %80 = vmatpush1.bf16.msra.mxu0 0
  %81 = vmatprep.subr.bf16.mxu0 0
  %82 = vmatpush1.bf16.msra.mxu0 0
  %83 = vmatprep.mubr.bf16.mxu0 0
  %84 = vmatmul.mubr.bf16.gmra.mrb[0].mxu0 %v49
  %v85 = vpop.f32.mrb[0].mxu0
  %v86 = vadd.f32 0.0, %v85
  %v87 = vpop.f32.mrb[0].mxu0
  %v88 = vpop.f32.mrb[0].mxu0
  %v89 = vadd.f32 0.0, %v88
  %v90 = vpop.f32.mrb[0].mxu0
  %91 = vdwg.mxu0
  %v92 = vadd.f32 %v30, %v86
  %v93 = vadd.f32 %v31, %v89
  %94 = vst [vmem:[#allocation2] sm:$0xff] %v92
  %95 = vst [vmem:[#allocation2 + $0x8] sm:$0xff] %v93
  // Predicated region
  $region30: #{sage_forward.3} parent=0 // pred_check
    %p96 = pneg %p24
  $region31: #{sage_forward.3} parent=0 // pred_check_branch
    %98 = sbr.rel (%p96) target = $region33
  $region32: #{sage_forward.3} parent=0 // pred_region
    %v99 = vld [vmem:[#allocation2] sm:$0xff]
    %v100 = vld [vmem:[#allocation2 + $0x8] sm:$0xff]
    %v101 = vpack.c.bf16 %v100, %v99
    %v102 = vld [vmem:[%s3] sm:$0xf]
    %v103 = vld [vmem:[%s3 + $0x4] sm:$0xf]
    %v104 = vld [vmem:[%s3 + $0x8] sm:$0xf]
    %v105 = vld [vmem:[%s3 + $0xc] sm:$0xf]
    %v106 = vld [vmem:[%s3 + $0x10] sm:$0xf]
    %v107 = vld [vmem:[%s3 + $0x14] sm:$0xf]
    %v108 = vld [vmem:[%s3 + $0x18] sm:$0xf]
    %v109 = vld [vmem:[%s3 + $0x1c] sm:$0xf]
    %v110 = vld [vmem:[%s3 + $0x20] sm:$0xf]
    %v111 = vld [vmem:[%s3 + $0x24] sm:$0xf]
    %v112 = vld [vmem:[%s3 + $0x28] sm:$0xf]
    %v113 = vld [vmem:[%s3 + $0x2c] sm:$0xf]
    %v114 = vld [vmem:[%s3 + $0x30] sm:$0xf]
    %v115 = vld [vmem:[%s3 + $0x34] sm:$0xf]
    %v116 = vld [vmem:[%s3 + $0x38] sm:$0xf]
    %v117 = vld [vmem:[%s3 + $0x3c] sm:$0xf]
    %v118 = vld [vmem:[%s2] sm:$0xf]
    %v119 = vld [vmem:[%s2 + $0x4] sm:$0xf]
    %v120 = vld [vmem:[%s4] sm:$0xf]
    %v121 = vld [vmem:[%s4 + $0x4] sm:$0xf]
    %v122 = vld [vmem:[%s4 + $0x8] sm:$0xf]
    %v123 = vld [vmem:[%s4 + $0xc] sm:$0xf]
    %v124 = vld [vmem:[%s4 + $0x10] sm:$0xf]
    %v125 = vld [vmem:[%s4 + $0x14] sm:$0xf]
    %v126 = vld [vmem:[%s4 + $0x18] sm:$0xf]
    %v127 = vld [vmem:[%s4 + $0x1c] sm:$0xf]
    %v128 = vld [vmem:[%s4 + $0x20] sm:$0xf]
    %v129 = vld [vmem:[%s4 + $0x24] sm:$0xf]
    %v130 = vld [vmem:[%s4 + $0x28] sm:$0xf]
    %v131 = vld [vmem:[%s4 + $0x2c] sm:$0xf]
    %v132 = vld [vmem:[%s4 + $0x30] sm:$0xf]
    %v133 = vld [vmem:[%s4 + $0x34] sm:$0xf]
    %v134 = vld [vmem:[%s4 + $0x38] sm:$0xf]
    %v135 = vld [vmem:[%s4 + $0x3c] sm:$0xf]
    %v138 = vunpack.c.l.b16 %v118
    %v139 = vunpack.c.l.b16 %v119
    %v140 = vpack.c.b16 %v139, %v138
    %v158 = vunpack.c.l.b16 %v120
    %v159 = vunpack.c.l.b16 %v121
    %v160 = vunpack.c.l.b16 %v122
    %v161 = vunpack.c.l.b16 %v123
    %v162 = vunpack.c.l.b16 %v124
    %v163 = vunpack.c.l.b16 %v125
    %v164 = vunpack.c.l.b16 %v126
    %v165 = vunpack.c.l.b16 %v127
    %v166 = vunpack.c.l.b16 %v128
    %v167 = vunpack.c.l.b16 %v129
    %v168 = vunpack.c.l.b16 %v130
    %v169 = vunpack.c.l.b16 %v131
    %v170 = vunpack.c.l.b16 %v132
    %v171 = vunpack.c.l.b16 %v133
    %v172 = vunpack.c.l.b16 %v134
    %v173 = vunpack.c.l.b16 %v135
    %v174 = vpack.c.b16 %v159, %v158
    %v175 = vpack.c.b16 %v161, %v160
    %v176 = vpack.c.b16 %v163, %v162
    %v177 = vpack.c.b16 %v165, %v164
    %v178 = vpack.c.b16 %v167, %v166
    %v179 = vpack.c.b16 %v169, %v168
    %v180 = vpack.c.b16 %v171, %v170
    %v181 = vpack.c.b16 %v173, %v172
    %190 = vmatprep.subr.bf16.mxu0 0
    %191 = vmatpush1.bf16.msra.mxu0 %v174
    %192 = vmatprep.subr.bf16.mxu0 0
    %193 = vmatpush1.bf16.msra.mxu0 %v175
    %194 = vmatprep.subr.bf16.mxu0 0
    %195 = vmatpush1.bf16.msra.mxu0 %v176
    %196 = vmatprep.subr.bf16.mxu0 0
    %197 = vmatpush1.bf16.msra.mxu0 %v177
    %198 = vmatprep.subr.bf16.mxu0 0
    %199 = vmatpush1.bf16.msra.mxu0 %v178
    %200 = vmatprep.subr.bf16.mxu0 0
    %201 = vmatpush1.bf16.msra.mxu0 %v179
    %202 = vmatprep.subr.bf16.mxu0 0
    %203 = vmatpush1.bf16.msra.mxu0 %v180
    %204 = vmatprep.subr.bf16.mxu0 0
    %205 = vmatpush1.bf16.msra.mxu0 %v181
    %206 = vmatprep.subr.bf16.mxu0 0
    %207 = vmatpush1.bf16.msra.mxu0 0
    %208 = vmatprep.subr.bf16.mxu0 0
    %209 = vmatpush1.bf16.msra.mxu0 0
    %210 = vmatprep.subr.bf16.mxu0 0
    %211 = vmatpush1.bf16.msra.mxu0 0
    %212 = vmatprep.subr.bf16.mxu0 0
    %213 = vmatpush1.bf16.msra.mxu0 0
    %214 = vmatprep.subr.bf16.mxu0 0
    %215 = vmatpush1.bf16.msra.mxu0 0
    %216 = vmatprep.subr.bf16.mxu0 0
    %217 = vmatpush1.bf16.msra.mxu0 0
    %218 = vmatprep.subr.bf16.mxu0 0
    %219 = vmatpush1.bf16.msra.mxu0 0
    %220 = vmatprep.subr.bf16.mxu0 0
    %221 = vmatpush1.bf16.msra.mxu0 0
    %222 = vmatprep.mubr.bf16.mxu0 0
    %223 = vmatmul.mubr.bf16.gmra.mrb[0].mxu0 %v140
    %v224 = vpop.f32.mrb[0].mxu0
    %v225 = vadd.f32 0.0, %v224
    %v226 = vpop.f32.mrb[0].mxu0
    %v227 = vpop.f32.mrb[0].mxu0
    %v228 = vadd.f32 0.0, %v227
    %v229 = vpop.f32.mrb[0].mxu0
    %230 = vdwg.mxu0
    %v247 = vunpack.c.l.b16 %v102
    %v248 = vunpack.c.l.b16 %v103
    %v249 = vunpack.c.l.b16 %v104
    %v250 = vunpack.c.l.b16 %v105
    %v251 = vunpack.c.l.b16 %v106
    %v252 = vunpack.c.l.b16 %v107
    %v253 = vunpack.c.l.b16 %v108
    %v254 = vunpack.c.l.b16 %v109
    %v255 = vunpack.c.l.b16 %v110
    %v256 = vunpack.c.l.b16 %v111
    %v257 = vunpack.c.l.b16 %v112
    %v258 = vunpack.c.l.b16 %v113
    %v259 = vunpack.c.l.b16 %v114
    %v260 = vunpack.c.l.b16 %v115
    %v261 = vunpack.c.l.b16 %v116
    %v262 = vunpack.c.l.b16 %v117
    %v263 = vpack.c.b16 %v248, %v247
    %v264 = vpack.c.b16 %v250, %v249
    %v265 = vpack.c.b16 %v252, %v251
    %v266 = vpack.c.b16 %v254, %v253
    %v267 = vpack.c.b16 %v256, %v255
    %v268 = vpack.c.b16 %v258, %v257
    %v269 = vpack.c.b16 %v260, %v259
    %v270 = vpack.c.b16 %v262, %v261
    %279 = vmatprep.subr.bf16.mxu0 0
    %280 = vmatpush1.bf16.msra.mxu0 %v263
    %281 = vmatprep.subr.bf16.mxu0 0
    %282 = vmatpush1.bf16.msra.mxu0 %v264
    %283 = vmatprep.subr.bf16.mxu0 0
    %284 = vmatpush1.bf16.msra.mxu0 %v265
    %285 = vmatprep.subr.bf16.mxu0 0
    %286 = vmatpush1.bf16.msra.mxu0 %v266
    %287 = vmatprep.subr.bf16.mxu0 0
    %288 = vmatpush1.bf16.msra.mxu0 %v267
    %289 = vmatprep.subr.bf16.mxu0 0
    %290 = vmatpush1.bf16.msra.mxu0 %v268
    %291 = vmatprep.subr.bf16.mxu0 0
    %292 = vmatpush1.bf16.msra.mxu0 %v269
    %293 = vmatprep.subr.bf16.mxu0 0
    %294 = vmatpush1.bf16.msra.mxu0 %v270
    %295 = vmatprep.subr.bf16.mxu0 0
    %296 = vmatpush1.bf16.msra.mxu0 0
    %297 = vmatprep.subr.bf16.mxu0 0
    %298 = vmatpush1.bf16.msra.mxu0 0
    %299 = vmatprep.subr.bf16.mxu0 0
    %300 = vmatpush1.bf16.msra.mxu0 0
    %301 = vmatprep.subr.bf16.mxu0 0
    %302 = vmatpush1.bf16.msra.mxu0 0
    %303 = vmatprep.subr.bf16.mxu0 0
    %304 = vmatpush1.bf16.msra.mxu0 0
    %305 = vmatprep.subr.bf16.mxu0 0
    %306 = vmatpush1.bf16.msra.mxu0 0
    %307 = vmatprep.subr.bf16.mxu0 0
    %308 = vmatpush1.bf16.msra.mxu0 0
    %309 = vmatprep.subr.bf16.mxu0 0
    %310 = vmatpush1.bf16.msra.mxu0 0
    %311 = vmatprep.mubr.bf16.mxu0 0
    %312 = vmatmul.mubr.bf16.gmra.mrb[0].mxu0 %v101
    %v313 = vpop.f32.mrb[0].mxu0
    %v314 = vadd.f32 %v225, %v313
    %v315 = vpop.f32.mrb[0].mxu0
    %v316 = vpop.f32.mrb[0].mxu0
    %v317 = vadd.f32 %v228, %v316
    %v318 = vpop.f32.mrb[0].mxu0
    %319 = vdwg.mxu0
    %v320 = vld [vmem:[%s5] sm:$0x1]
    %v322 = vlaneseq
    %v323 = vshrl.u32 %v322, 7
    %v324 = vsub.s32 0, %v323
    %v325 = vrot.slane %v320, %v324
    %v327 = vadd.f32 %v314, %v325
    %v328 = vadd.f32 %v317, %v325
    %v329 = vmax.f32 %v327, 0.0
    %v330 = vmax.f32 %v328, 0.0
    %v331 = vpack.c.bf16 %v330, %v329
    %v333 = vunpack.c.l.b16 %v331
    %v334 = vunpack.c.h.b16 %v331
    %v335 = vpack.c.b16 %v333, %v333
    %v336 = vpack.c.b16 %v334, %v334
    %339 = vst [vmem:[%s6] sm:$0xf] %v335
    %340 = vst [vmem:[%s6 + $0x4] sm:$0xf] %v336
  $region33: #{sage_forward.3} parent=0 // pred_fallthru
    _
  // Predicated region
  $region34: #{sage_forward.3} parent=0 // pred_check
    _
  $region35: #{sage_forward.3} parent=0 // pred_check_branch
    %342 = sbr.rel (0) target = $region37
  $region36: #{sage_forward.3} parent=0 // pred_region
    _
  $region37: #{sage_forward.3} parent=0 // pred_fallthru
    _
  // Predicated region
  $region38: #{sage_forward.3} parent=0 // pred_check
    _
  $region39: #{sage_forward.3} parent=0 // pred_check_branch
    %344 = sbr.rel (0) target = $region41
  $region40: #{sage_forward.3} parent=0 // pred_region
    _
  $region41: #{sage_forward.3} parent=0 // pred_fallthru
    _

// kernel: sage_forward.5
$region0: #{sage_forward.5}
  #allocation0 [shape = 'u32[]', space=smem, size = 0x4, offset = 0x4, fixed_abs, tag = 'smem constant byte address 0x4 - core index']
  #allocation1 [shape = 'u32[144,128]{1,0:T(1,128)}', space=vmem, size = 0x12000, scoped, tag = 'internal scratch']
  #allocation2 [shape = 'f32[16,128]{1,0:T(8,128)}', space=vmem, size = 0x2000, scoped, tag = 'scratch operand']
  %s0 = inlined_call_operand.vmem [shape: bf16[16,16], index: 0, kind: input, shape index: {}]
  %s1 = inlined_call_operand.vmem [shape: bf16[16,128], index: 1, kind: input, shape index: {}, may-alias: {1,2}]
  %s2 = inlined_call_operand.vmem [shape: bf16[16,128], index: 2, kind: input, shape index: {}, may-alias: {1,2}]
  %s3 = inlined_call_operand.vmem [shape: bf16[128,128], index: 3, kind: input, shape index: {}]
  %s4 = inlined_call_operand.vmem [shape: bf16[128,128], index: 4, kind: input, shape index: {}]
  %s5 = inlined_call_operand.vmem [shape: f32[1,128], index: 5, kind: input, shape index: {}]
  %s6 = inlined_call_operand.hbm [shape: f32[16,128], index: 6, kind: output, shape index: {}]
  %s7 = sld [smem:[#allocation0]]
  $region42: #{sage_forward.5} parent=0
    _
  %s9 = ssub.s32 1, %s7
  %s10 = scalar_select 0, %s9, %s7
  $region1: #{sage_forward.5} parent=0
    #allocation3 [shape = 'u8[8192]{0}', space=vmem, size = 0x2000, scoped, tag = 'output window, operand 0, single buffered']
    #allocation4 [shape = 's32[1]{0}', space=sflag, size = 0x4, scoped, tag = 'scoped memory for sage_forward.5']
    %11 = vsyncpa [#allocation4], 0
    // Predicated region
    $region2: #{sage_forward.5} parent=1 // pred_check
      _
    $region3: #{sage_forward.5} parent=1 // pred_check_branch
      %13 = sbr.rel (0) target = $region5
    $region4: #{sage_forward.5} parent=1 // pred_region
      _
    $region5: #{sage_forward.5} parent=1 // pred_fallthru
      _
    // Predicated region
    $region6: #{sage_forward.5} parent=1 // pred_check
      _
    $region7: #{sage_forward.5} parent=1 // pred_check_branch
      %15 = sbr.rel (0) target = $region9
    $region8: #{sage_forward.5} parent=1 // pred_region
      _
    $region9: #{sage_forward.5} parent=1 // pred_fallthru
      _
    // Predicated region
    $region10: #{sage_forward.5} parent=1 // pred_check
      _
    $region11: #{sage_forward.5} parent=1 // pred_check_branch
      %17 = sbr.rel (0) target = $region13
    $region12: #{sage_forward.5} parent=1 // pred_region
      _
    $region13: #{sage_forward.5} parent=1 // pred_fallthru
      _
    // Predicated region
    $region14: #{sage_forward.5} parent=1 // pred_check
      _
    $region15: #{sage_forward.5} parent=1 // pred_check_branch
      %19 = sbr.rel (0) target = $region17
    $region16: #{sage_forward.5} parent=1 // pred_region
      _
    $region17: #{sage_forward.5} parent=1 // pred_fallthru
      _
    // Predicated region
    $region18: #{sage_forward.5} parent=1 // pred_check
      _
    $region19: #{sage_forward.5} parent=1 // pred_check_branch
      %21 = sbr.rel (0) target = $region21
    $region20: #{sage_forward.5} parent=1 // pred_region
      _
    $region21: #{sage_forward.5} parent=1 // pred_fallthru
      _
    // Predicated region
    $region22: #{sage_forward.5} parent=1 // pred_check
      _
    $region23: #{sage_forward.5} parent=1 // pred_check_branch
      %23 = sbr.rel (0) target = $region25
    $region24: #{sage_forward.5} parent=1 // pred_region
      _
    $region25: #{sage_forward.5} parent=1 // pred_fallthru
      _
    %p25 = scmp.eq.s32.totalorder 0, 0
    // Predicated region
    $region26: #{sage_forward.5} parent=1 // pred_check
      %p26 = pneg %p25
    $region27: #{sage_forward.5} parent=1 // pred_check_branch
      %28 = sbr.rel (%p26) target = $region29
    $region28: #{sage_forward.5} parent=1 // pred_region
      %29 = vst [vmem:[#allocation2] sm:$0xff] 0.0
      %30 = vst [vmem:[#allocation2 + $0x8] sm:$0xff] 0.0
    $region29: #{sage_forward.5} parent=1 // pred_fallthru
      _
    %v31 = vld [vmem:[#allocation2] sm:$0xff]
    %v32 = vld [vmem:[#allocation2 + $0x8] sm:$0xff]
    %v33 = vld [vmem:[%s0] sm:$0xf]
    %v34 = vld [vmem:[%s0 + $0x4] sm:$0xf]
    %v35 = vld [vmem:[%s1] sm:$0xf]
    %v36 = vld [vmem:[%s1 + $0x4] sm:$0xf]
    %v39 = vunpack.c.l.b16 %v33
    %v40 = vunpack.c.l.b16 %v34
    %v41 = vpack.c.b16 %v40, %v39
    %v44 = vunpack.c.l.b16 %v35
    %v45 = vunpack.c.l.b16 %v36
    %v46 = vpack.c.b16 %v45, %v44
    %vm48 = vcmask 130048
    %v50 = vsel %vm48, %v41, 0
    %52 = vmatprep.subr.bf16.mxu0 0
    %53 = vmatpush1.bf16.msra.mxu0 %v46
    %54 = vmatprep.subr.bf16.mxu0 0
    %55 = vmatpush1.bf16.msra.mxu0 0
    %56 = vmatprep.subr.bf16.mxu0 0
    %57 = vmatpush1.bf16.msra.mxu0 0
    %58 = vmatprep.subr.bf16.mxu0 0
    %59 = vmatpush1.bf16.msra.mxu0 0
    %60 = vmatprep.subr.bf16.mxu0 0
    %61 = vmatpush1.bf16.msra.mxu0 0
    %62 = vmatprep.subr.bf16.mxu0 0
    %63 = vmatpush1.bf16.msra.mxu0 0
    %64 = vmatprep.subr.bf16.mxu0 0
    %65 = vmatpush1.bf16.msra.mxu0 0
    %66 = vmatprep.subr.bf16.mxu0 0
    %67 = vmatpush1.bf16.msra.mxu0 0
    %68 = vmatprep.subr.bf16.mxu0 0
    %69 = vmatpush1.bf16.msra.mxu0 0
    %70 = vmatprep.subr.bf16.mxu0 0
    %71 = vmatpush1.bf16.msra.mxu0 0
    %72 = vmatprep.subr.bf16.mxu0 0
    %73 = vmatpush1.bf16.msra.mxu0 0
    %74 = vmatprep.subr.bf16.mxu0 0
    %75 = vmatpush1.bf16.msra.mxu0 0
    %76 = vmatprep.subr.bf16.mxu0 0
    %77 = vmatpush1.bf16.msra.mxu0 0
    %78 = vmatprep.subr.bf16.mxu0 0
    %79 = vmatpush1.bf16.msra.mxu0 0
    %80 = vmatprep.subr.bf16.mxu0 0
    %81 = vmatpush1.bf16.msra.mxu0 0
    %82 = vmatprep.subr.bf16.mxu0 0
    %83 = vmatpush1.bf16.msra.mxu0 0
    %84 = vmatprep.mubr.bf16.mxu0 0
    %85 = vmatmul.mubr.bf16.gmra.mrb[0].mxu0 %v50
    %v86 = vpop.f32.mrb[0].mxu0
    %v87 = vadd.f32 0.0, %v86
    %v88 = vpop.f32.mrb[0].mxu0
    %v89 = vpop.f32.mrb[0].mxu0
    %v90 = vadd.f32 0.0, %v89
    %v91 = vpop.f32.mrb[0].mxu0
    %92 = vdwg.mxu0
    %v93 = vadd.f32 %v31, %v87
    %v94 = vadd.f32 %v32, %v90
    %95 = vst [vmem:[#allocation2] sm:$0xff] %v93
    %96 = vst [vmem:[#allocation2 + $0x8] sm:$0xff] %v94
    // Predicated region
    $region30: #{sage_forward.5} parent=1 // pred_check
      %p97 = pneg %p25
    $region31: #{sage_forward.5} parent=1 // pred_check_branch
      %99 = sbr.rel (%p97) target = $region33
    $region32: #{sage_forward.5} parent=1 // pred_region
      %v100 = vld [vmem:[#allocation2] sm:$0xff]
      %v101 = vld [vmem:[#allocation2 + $0x8] sm:$0xff]
      %v102 = vpack.c.bf16 %v101, %v100
      %v103 = vld [vmem:[%s3] sm:$0xf]
      %v104 = vld [vmem:[%s3 + $0x4] sm:$0xf]
      %v105 = vld [vmem:[%s3 + $0x8] sm:$0xf]
      %v106 = vld [vmem:[%s3 + $0xc] sm:$0xf]
      %v107 = vld [vmem:[%s3 + $0x10] sm:$0xf]
      %v108 = vld [vmem:[%s3 + $0x14] sm:$0xf]
      %v109 = vld [vmem:[%s3 + $0x18] sm:$0xf]
      %v110 = vld [vmem:[%s3 + $0x1c] sm:$0xf]
      %v111 = vld [vmem:[%s3 + $0x20] sm:$0xf]
      %v112 = vld [vmem:[%s3 + $0x24] sm:$0xf]
      %v113 = vld [vmem:[%s3 + $0x28] sm:$0xf]
      %v114 = vld [vmem:[%s3 + $0x2c] sm:$0xf]
      %v115 = vld [vmem:[%s3 + $0x30] sm:$0xf]
      %v116 = vld [vmem:[%s3 + $0x34] sm:$0xf]
      %v117 = vld [vmem:[%s3 + $0x38] sm:$0xf]
      %v118 = vld [vmem:[%s3 + $0x3c] sm:$0xf]
      %v119 = vld [vmem:[%s2] sm:$0xf]
      %v120 = vld [vmem:[%s2 + $0x4] sm:$0xf]
      %v121 = vld [vmem:[%s4] sm:$0xf]
      %v122 = vld [vmem:[%s4 + $0x4] sm:$0xf]
      %v123 = vld [vmem:[%s4 + $0x8] sm:$0xf]
      %v124 = vld [vmem:[%s4 + $0xc] sm:$0xf]
      %v125 = vld [vmem:[%s4 + $0x10] sm:$0xf]
      %v126 = vld [vmem:[%s4 + $0x14] sm:$0xf]
      %v127 = vld [vmem:[%s4 + $0x18] sm:$0xf]
      %v128 = vld [vmem:[%s4 + $0x1c] sm:$0xf]
      %v129 = vld [vmem:[%s4 + $0x20] sm:$0xf]
      %v130 = vld [vmem:[%s4 + $0x24] sm:$0xf]
      %v131 = vld [vmem:[%s4 + $0x28] sm:$0xf]
      %v132 = vld [vmem:[%s4 + $0x2c] sm:$0xf]
      %v133 = vld [vmem:[%s4 + $0x30] sm:$0xf]
      %v134 = vld [vmem:[%s4 + $0x34] sm:$0xf]
      %v135 = vld [vmem:[%s4 + $0x38] sm:$0xf]
      %v136 = vld [vmem:[%s4 + $0x3c] sm:$0xf]
      %v139 = vunpack.c.l.b16 %v119
      %v140 = vunpack.c.l.b16 %v120
      %v141 = vpack.c.b16 %v140, %v139
      %v159 = vunpack.c.l.b16 %v121
      %v160 = vunpack.c.l.b16 %v122
      %v161 = vunpack.c.l.b16 %v123
      %v162 = vunpack.c.l.b16 %v124
      %v163 = vunpack.c.l.b16 %v125
      %v164 = vunpack.c.l.b16 %v126
      %v165 = vunpack.c.l.b16 %v127
      %v166 = vunpack.c.l.b16 %v128
      %v167 = vunpack.c.l.b16 %v129
      %v168 = vunpack.c.l.b16 %v130
      %v169 = vunpack.c.l.b16 %v131
      %v170 = vunpack.c.l.b16 %v132
      %v171 = vunpack.c.l.b16 %v133
      %v172 = vunpack.c.l.b16 %v134
      %v173 = vunpack.c.l.b16 %v135
      %v174 = vunpack.c.l.b16 %v136
      %v175 = vpack.c.b16 %v160, %v159
      %v176 = vpack.c.b16 %v162, %v161
      %v177 = vpack.c.b16 %v164, %v163
      %v178 = vpack.c.b16 %v166, %v165
      %v179 = vpack.c.b16 %v168, %v167
      %v180 = vpack.c.b16 %v170, %v169
      %v181 = vpack.c.b16 %v172, %v171
      %v182 = vpack.c.b16 %v174, %v173
      %191 = vmatprep.subr.bf16.mxu0 0
      %192 = vmatpush1.bf16.msra.mxu0 %v175
      %193 = vmatprep.subr.bf16.mxu0 0
      %194 = vmatpush1.bf16.msra.mxu0 %v176
      %195 = vmatprep.subr.bf16.mxu0 0
      %196 = vmatpush1.bf16.msra.mxu0 %v177
      %197 = vmatprep.subr.bf16.mxu0 0
      %198 = vmatpush1.bf16.msra.mxu0 %v178
      %199 = vmatprep.subr.bf16.mxu0 0
      %200 = vmatpush1.bf16.msra.mxu0 %v179
      %201 = vmatprep.subr.bf16.mxu0 0
      %202 = vmatpush1.bf16.msra.mxu0 %v180
      %203 = vmatprep.subr.bf16.mxu0 0
      %204 = vmatpush1.bf16.msra.mxu0 %v181
      %205 = vmatprep.subr.bf16.mxu0 0
      %206 = vmatpush1.bf16.msra.mxu0 %v182
      %207 = vmatprep.subr.bf16.mxu0 0
      %208 = vmatpush1.bf16.msra.mxu0 0
      %209 = vmatprep.subr.bf16.mxu0 0
      %210 = vmatpush1.bf16.msra.mxu0 0
      %211 = vmatprep.subr.bf16.mxu0 0
      %212 = vmatpush1.bf16.msra.mxu0 0
      %213 = vmatprep.subr.bf16.mxu0 0
      %214 = vmatpush1.bf16.msra.mxu0 0
      %215 = vmatprep.subr.bf16.mxu0 0
      %216 = vmatpush1.bf16.msra.mxu0 0
      %217 = vmatprep.subr.bf16.mxu0 0
      %218 = vmatpush1.bf16.msra.mxu0 0
      %219 = vmatprep.subr.bf16.mxu0 0
      %220 = vmatpush1.bf16.msra.mxu0 0
      %221 = vmatprep.subr.bf16.mxu0 0
      %222 = vmatpush1.bf16.msra.mxu0 0
      %223 = vmatprep.mubr.bf16.mxu0 0
      %224 = vmatmul.mubr.bf16.gmra.mrb[0].mxu0 %v141
      %v225 = vpop.f32.mrb[0].mxu0
      %v226 = vadd.f32 0.0, %v225
      %v227 = vpop.f32.mrb[0].mxu0
      %v228 = vpop.f32.mrb[0].mxu0
      %v229 = vadd.f32 0.0, %v228
      %v230 = vpop.f32.mrb[0].mxu0
      %231 = vdwg.mxu0
      %v248 = vunpack.c.l.b16 %v103
      %v249 = vunpack.c.l.b16 %v104
      %v250 = vunpack.c.l.b16 %v105
      %v251 = vunpack.c.l.b16 %v106
      %v252 = vunpack.c.l.b16 %v107
      %v253 = vunpack.c.l.b16 %v108
      %v254 = vunpack.c.l.b16 %v109
      %v255 = vunpack.c.l.b16 %v110
      %v256 = vunpack.c.l.b16 %v111
      %v257 = vunpack.c.l.b16 %v112
      %v258 = vunpack.c.l.b16 %v113
      %v259 = vunpack.c.l.b16 %v114
      %v260 = vunpack.c.l.b16 %v115
      %v261 = vunpack.c.l.b16 %v116
      %v262 = vunpack.c.l.b16 %v117
      %v263 = vunpack.c.l.b16 %v118
      %v264 = vpack.c.b16 %v249, %v248
      %v265 = vpack.c.b16 %v251, %v250
      %v266 = vpack.c.b16 %v253, %v252
      %v267 = vpack.c.b16 %v255, %v254
      %v268 = vpack.c.b16 %v257, %v256
      %v269 = vpack.c.b16 %v259, %v258
      %v270 = vpack.c.b16 %v261, %v260
      %v271 = vpack.c.b16 %v263, %v262
      %280 = vmatprep.subr.bf16.mxu0 0
      %281 = vmatpush1.bf16.msra.mxu0 %v264
      %282 = vmatprep.subr.bf16.mxu0 0
      %283 = vmatpush1.bf16.msra.mxu0 %v265
      %284 = vmatprep.subr.bf16.mxu0 0
      %285 = vmatpush1.bf16.msra.mxu0 %v266
      %286 = vmatprep.subr.bf16.mxu0 0
      %287 = vmatpush1.bf16.msra.mxu0 %v267
      %288 = vmatprep.subr.bf16.mxu0 0
      %289 = vmatpush1.bf16.msra.mxu0 %v268
      %290 = vmatprep.subr.bf16.mxu0 0
      %291 = vmatpush1.bf16.msra.mxu0 %v269
      %292 = vmatprep.subr.bf16.mxu0 0
      %293 = vmatpush1.bf16.msra.mxu0 %v270
      %294 = vmatprep.subr.bf16.mxu0 0
      %295 = vmatpush1.bf16.msra.mxu0 %v271
      %296 = vmatprep.subr.bf16.mxu0 0
      %297 = vmatpush1.bf16.msra.mxu0 0
      %298 = vmatprep.subr.bf16.mxu0 0
      %299 = vmatpush1.bf16.msra.mxu0 0
      %300 = vmatprep.subr.bf16.mxu0 0
      %301 = vmatpush1.bf16.msra.mxu0 0
      %302 = vmatprep.subr.bf16.mxu0 0
      %303 = vmatpush1.bf16.msra.mxu0 0
      %304 = vmatprep.subr.bf16.mxu0 0
      %305 = vmatpush1.bf16.msra.mxu0 0
      %306 = vmatprep.subr.bf16.mxu0 0
      %307 = vmatpush1.bf16.msra.mxu0 0
      %308 = vmatprep.subr.bf16.mxu0 0
      %309 = vmatpush1.bf16.msra.mxu0 0
      %310 = vmatprep.subr.bf16.mxu0 0
      %311 = vmatpush1.bf16.msra.mxu0 0
      %312 = vmatprep.mubr.bf16.mxu0 0
      %313 = vmatmul.mubr.bf16.gmra.mrb[0].mxu0 %v102
      %v314 = vpop.f32.mrb[0].mxu0
      %v315 = vadd.f32 %v226, %v314
      %v316 = vpop.f32.mrb[0].mxu0
      %v317 = vpop.f32.mrb[0].mxu0
      %v318 = vadd.f32 %v229, %v317
      %v319 = vpop.f32.mrb[0].mxu0
      %320 = vdwg.mxu0
      %v321 = vld [vmem:[%s5] sm:$0x1]
      %v323 = vlaneseq
      %v324 = vshrl.u32 %v323, 7
      %v325 = vsub.s32 0, %v324
      %v326 = vrot.slane %v321, %v325
      %v328 = vadd.f32 %v315, %v326
      %v329 = vadd.f32 %v318, %v326
      %330 = vst [vmem:[#allocation3] sm:$0xff] %v328
      %331 = vst [vmem:[#allocation3 + $0x8] sm:$0xff] %v329
    $region33: #{sage_forward.5} parent=1 // pred_fallthru
      _
    // Predicated region
    $region34: #{sage_forward.5} parent=1 // pred_check
      _
    $region35: #{sage_forward.5} parent=1 // pred_check_branch
      %333 = sbr.rel (0) target = $region37
    $region36: #{sage_forward.5} parent=1 // pred_region
      %s335 = ssub.s32 256, 256
      %336 = vsyncadd [#allocation4], %s335
      %s337 = sshll.u32 [#allocation3], 4
      %s338 = int_to_ptr.vmem [resolvable:$true] %s337
      %343 = dma.vmem_to_hbm [thread:$0]  %s338, 256, %s6, [#allocation4], 128, 128, 8
    $region37: #{sage_forward.5} parent=1 // pred_fallthru
      _
    // Predicated region
    $region38: #{sage_forward.5} parent=1 // pred_check
      _
    $region39: #{sage_forward.5} parent=1 // pred_check_branch
      %345 = sbr.rel (0) target = $region41
    $region40: #{sage_forward.5} parent=1 // pred_region
      %346 = dma.done [#allocation4], 256
    $region41: #{sage_forward.5} parent=1 // pred_fallthru
      _
    %347 = vsyncpa [#allocation4], 1

</llo_original>
